<compile_context>
chip_gen: v5e
topology: v5e:2x2
jax: 0.10.0
libtpu: 0.0.40
codegen_flags: <defaults>
</compile_context>

<pallas_src>
import numpy as np
import jax
import jax.numpy as jnp
from jax.experimental import pallas as pl
from jax.experimental.pallas import tpu as pltpu

# ---------------- model hyper-parameters (small, consistent with the module) ----
BATCH = 16
INPUT_DIM = 32
HIDDEN_DIM = [64]            # MLP default hidden_dim
OUTPUT_DIM = 8               # "bc_8D": 8-D output head
EPS = 1e-5                   # nn.BatchNorm1d default eps
PAD = 128                    # lane-dense feature padding


# ---------------- Pallas kernel ---------------------------------------------------
def make_mlp_kernel(layer_n: int, head: bool):
    """Fused kernel: layer_n x (matmul + folded-BN shift [+ ReLU]) in one body."""

    def kernel(x_ref, w_ref, t_ref, o_ref):
        x = x_ref[...]                                    # (BATCH, PAD) bf16
        for i in range(layer_n):
            w = w_ref[i * PAD:(i + 1) * PAD, :]           # (PAD, PAD) bf16, static view
            y = jnp.dot(x, w, preferred_element_type=jnp.float32)
            y = y + t_ref[8 * i:8 * i + 1, :]             # folded bias/BN shift (f32 VPU)
            if i < layer_n - 1 or not head:
                y = jnp.maximum(y, 0.0)                   # ReLU (f32 VPU; padded lanes stay 0)
            x = y.astype(jnp.bfloat16) if i < layer_n - 1 else y
        o_ref[...] = x.astype(o_ref.dtype)                # lane-dense (BATCH, PAD) store

    return kernel


# ---------------- pallas_call wrapper ---------------------------------------------
def mlp_forward(x, w_slab, t_slab, layer_n: int, out_dim: int, head: bool = False):
    batch, in_dim = x.shape
    # Lane-dense bf16 input (zero-padded feature columns contribute nothing:
    # the corresponding weight rows are zero).
    x_pad = jnp.zeros((batch, PAD), jnp.bfloat16).at[:, :in_dim].set(
        x.astype(jnp.bfloat16))
    vmem = pl.BlockSpec(memory_space=pltpu.MemorySpace.VMEM)
    out_pad = pl.pallas_call(
        make_mlp_kernel(layer_n, head),
        out_shape=jax.ShapeDtypeStruct((batch, PAD), jnp.float32),
        in_specs=[vmem, vmem, vmem],
        out_specs=vmem,
    )(x_pad, w_slab, t_slab)
    return out_pad[:, :out_dim]


# ---------------- deterministic parameter construction ----------------------------
def make_raw_params():
    """PyTorch-style params: per layer (W(out,in), b, gamma, beta, run_mean, run_var)."""
    key = jax.random.PRNGKey(42)
    dims = [INPUT_DIM] + HIDDEN_DIM + [OUTPUT_DIM]
    raw = []
    for i in range(len(dims) - 1):
        key, kw, kb, kg, kbe, km, kv = jax.random.split(key, 7)
        bound = 1.0 / np.sqrt(dims[i])
        w = jax.random.uniform(kw, (dims[i + 1], dims[i]), jnp.float32, -bound, bound)
        b = jax.random.uniform(kb, (dims[i + 1],), jnp.float32, -bound, bound)
        gamma = 1.0 + 0.1 * jax.random.normal(kg, (dims[i + 1],), jnp.float32)
        beta = 0.1 * jax.random.normal(kbe, (dims[i + 1],), jnp.float32)
        mean = 0.1 * jax.random.normal(km, (dims[i + 1],), jnp.float32)
        var = jnp.abs(jax.random.normal(kv, (dims[i + 1],), jnp.float32)) + 0.5
        raw.append((w, b, gamma, beta, mean, var))
    return raw


def fold_params(raw, head: bool = False):
    """Host-side prep: fold eval-BN into W/shift (in f32), pad to 128 lanes,
    pack into one bf16 weight slab + one f32 shift slab."""
    layer_n = len(raw)
    w_blocks, t_blocks = [], []
    for i, (w, b, gamma, beta, mean, var) in enumerate(raw):
        in_d, out_d = w.shape[1], w.shape[0]
        assert in_d <= PAD and out_d <= PAD
        w_t = w.T                                             # (in, out) f32
        if i < layer_n - 1 or not head:
            scale = gamma * jax.lax.rsqrt(var + EPS)
            shift = beta - mean * scale
            w_fold = w_t * scale[None, :]                     # fold in f32 before bf16 cast
            t_fold = scale * b + shift
        else:                                                 # head=True: plain Linear
            w_fold, t_fold = w_t, b
        w_pad = jnp.zeros((PAD, PAD), jnp.float32).at[:in_d, :out_d].set(w_fold)
        t_pad = jnp.zeros((8, PAD), jnp.float32).at[0, :out_d].set(t_fold)
        w_blocks.append(w_pad)
        t_blocks.append(t_pad)
    w_slab = jnp.concatenate(w_blocks, axis=0).astype(jnp.bfloat16)  # (layer_n*128, 128)
    t_slab = jnp.concatenate(t_blocks, axis=0)                       # (layer_n*8, 128) f32
    return w_slab, t_slab


# ---------------- pure-JAX f32 reference (mirrors the PyTorch forward) ------------
def ref_forward(x, raw, head: bool = False):
    layer_n = len(raw)
    for i, (w, b, gamma, beta, mean, var) in enumerate(raw):
        x = x @ w.T + b
        if i < layer_n - 1 or not head:
            x = (x - mean) / jnp.sqrt(var + EPS) * gamma + beta   # eval BatchNorm1d
            x = jnp.maximum(x, 0.0)                               # ReLU
    return x


# ---------------- main -------------------------------------------------------------
if __name__ == "__main__":
    raw_params = make_raw_params()
    layer_n = len(raw_params)
    w_slab, t_slab = fold_params(raw_params, head=False)

    x = jax.random.normal(jax.random.PRNGKey(0), (BATCH, INPUT_DIM), jnp.float32)

    out = mlp_forward(x, w_slab, t_slab, layer_n, OUTPUT_DIM, head=False)
    jax.block_until_ready(out)

    ref = ref_forward(x, raw_params, head=False)
    # Tolerance reflects bf16 weight/activation storage (MXU accumulates in f32).
    np.testing.assert_allclose(np.asarray(out), np.asarray(ref), rtol=5e-2, atol=5e-2)
    assert out.shape == (BATCH, OUTPUT_DIM)
    print("KERNEL_OK")
</pallas_src>

<mosaic_0001>
module attributes {stable_mosaic.version = 11 : i64} {
  func.func @kernel(%arg0: memref<16x128xbf16, #tpu.memory_space<vmem>>, %arg1: memref<256x128xbf16, #tpu.memory_space<vmem>>, %arg2: memref<16x128xf32, #tpu.memory_space<vmem>>, %arg3: memref<16x128xf32, #tpu.memory_space<vmem>>) attributes {dimension_semantics = [], scalar_prefetch = 0 : i64, scratch_operands = 0 : i64, tpu.core_type = #tpu.core_type<tc>} {
    %c0 = arith.constant 0 : index
    %c0_0 = arith.constant 0 : index
    %0 = vector.load %arg0[%c0, %c0_0] : memref<16x128xbf16, #tpu.memory_space<vmem>>, vector<16x128xbf16>
    %c0_1 = arith.constant 0 : index
    %c0_2 = arith.constant 0 : index
    %1 = vector.load %arg1[%c0_1, %c0_2] : memref<256x128xbf16, #tpu.memory_space<vmem>>, vector<128x128xbf16>
    %cst = arith.constant dense<0.000000e+00> : vector<16x128xf32>
    %2 = tpu.matmul %0, %1, %cst {dimension_numbers = #tpu.dot_dimension_numbers<[1], [0], [0], [1], [0, 0, 1, 1], [], []>} : vector<16x128xbf16>, vector<128x128xbf16>, vector<16x128xf32> -> vector<16x128xf32>
    %c0_3 = arith.constant 0 : index
    %c0_4 = arith.constant 0 : index
    %3 = vector.load %arg2[%c0_3, %c0_4] : memref<16x128xf32, #tpu.memory_space<vmem>>, vector<1x128xf32>
    %4 = vector.broadcast %3 : vector<1x128xf32> to vector<16x128xf32>
    %5 = arith.addf %2, %4 : vector<16x128xf32>
    %cst_5 = arith.constant 0.000000e+00 : f32
    %6 = vector.broadcast %cst_5 : f32 to vector<16x128xf32>
    %7 = arith.maximumf %5, %6 : vector<16x128xf32>
    %8 = arith.truncf %7 : vector<16x128xf32> to vector<16x128xbf16>
    %c128 = arith.constant 128 : index
    %c0_6 = arith.constant 0 : index
    %9 = vector.load %arg1[%c128, %c0_6] : memref<256x128xbf16, #tpu.memory_space<vmem>>, vector<128x128xbf16>
    %cst_7 = arith.constant dense<0.000000e+00> : vector<16x128xf32>
    %10 = tpu.matmul %8, %9, %cst_7 {dimension_numbers = #tpu.dot_dimension_numbers<[1], [0], [0], [1], [0, 0, 1, 1], [], []>} : vector<16x128xbf16>, vector<128x128xbf16>, vector<16x128xf32> -> vector<16x128xf32>
    %c8 = arith.constant 8 : index
    %c0_8 = arith.constant 0 : index
    %11 = vector.load %arg2[%c8, %c0_8] : memref<16x128xf32, #tpu.memory_space<vmem>>, vector<1x128xf32>
    %12 = vector.broadcast %11 : vector<1x128xf32> to vector<16x128xf32>
    %13 = arith.addf %10, %12 : vector<16x128xf32>
    %cst_9 = arith.constant 0.000000e+00 : f32
    %14 = vector.broadcast %cst_9 : f32 to vector<16x128xf32>
    %15 = arith.maximumf %13, %14 : vector<16x128xf32>
    %c0_10 = arith.constant 0 : index
    %c0_11 = arith.constant 0 : index
    %16 = vector.load %arg3[%c0_10, %c0_11] : memref<16x128xf32, #tpu.memory_space<vmem>>, vector<16x128xf32>
    tpu.vector_store %arg3[%c0_10, %c0_11], %15 {strides = array<i32>} : memref<16x128xf32, #tpu.memory_space<vmem>>, vector<16x128xf32>,
    return
  }
}

</mosaic_0001>

<llo_original>
// kernel: tpu_custom_call.1
$region0: #{tpu_custom_call.1}
  #allocation0 [shape = 'u32[]', space=smem, size = 0x4, offset = 0x4, fixed_abs, tag = 'smem constant byte address 0x4 - core index']
  #allocation1 [shape = 'u32[72,128]{1,0:T(1,128)}', space=vmem, size = 0x9000, scoped, tag = 'internal scratch']
  %s0 = inlined_call_operand.hbm [shape: bf16[16,128], index: 0, kind: input, shape index: {}]
  %s1 = inlined_call_operand.hbm [shape: bf16[256,128], index: 1, kind: input, shape index: {}]
  %s2 = inlined_call_operand.hbm [shape: f32[16,128], index: 2, kind: input, shape index: {}]
  %s3 = inlined_call_operand.hbm [shape: f32[16,128], index: 3, kind: output, shape index: {}]
  %s4 = sld [smem:[#allocation0]]
  $region34: #{tpu_custom_call.1} parent=0
    _
  %s6 = ssub.s32 1, %s4
  %s7 = scalar_select 0, %s6, %s4
  $region1: #{tpu_custom_call.1} parent=0
    #allocation2 [shape = 'u8[4096]{0}', space=vmem, size = 0x1000, scoped, tag = 'input window, operand 0, single buffered']
    #allocation3 [shape = 's32[1]{0}', space=sflag, size = 0x4, scoped, tag = 'scoped memory for tpu_custom_call.1']
    #allocation4 [shape = 's32[1]{0}', space=sflag, size = 0x4, scoped, tag = 'scoped memory for tpu_custom_call.1']
    #allocation5 [shape = 'u8[65536]{0}', space=vmem, size = 0x10000, scoped, tag = 'input window, operand 1, single buffered']
    #allocation6 [shape = 's32[1]{0}', space=sflag, size = 0x4, scoped, tag = 'scoped memory for tpu_custom_call.1']
    #allocation7 [shape = 'u8[8192]{0}', space=vmem, size = 0x2000, scoped, tag = 'input window, operand 2, single buffered']
    #allocation8 [shape = 'u8[8192]{0}', space=vmem, size = 0x2000, scoped, tag = 'output window, operand 0, single buffered']
    %8 = vsyncpa [#allocation3], 0
    %9 = vsyncpa [#allocation6], 0
    %10 = vsyncpa [#allocation4], 0
    // Predicated region
    $region2: #{tpu_custom_call.1} parent=1 // pred_check
      _
    $region3: #{tpu_custom_call.1} parent=1 // pred_check_branch
      %12 = sbr.rel (0) target = $region5
    $region4: #{tpu_custom_call.1} parent=1 // pred_region
      %14 = vsyncadd [#allocation3], 0
      %s15 = sshll.u32 %s0, 4
      %s16 = int_to_ptr.hbm [resolvable:$true] %s15
      %s17 = sshll.u32 [#allocation2], 4
      %s18 = int_to_ptr.vmem [resolvable:$true] %s17
      %23 = dma.hbm_to_vmem [thread:$0]  %s16, 128, %s18, [#allocation3], 64, 64, 4
    $region5: #{tpu_custom_call.1} parent=1 // pred_fallthru
      _
    // Predicated region
    $region6: #{tpu_custom_call.1} parent=1 // pred_check
      _
    $region7: #{tpu_custom_call.1} parent=1 // pred_check_branch
      %25 = sbr.rel (0) target = $region9
    $region8: #{tpu_custom_call.1} parent=1 // pred_region
      %27 = vsyncadd [#allocation6], 0
      %s28 = sshll.u32 %s1, 4
      %s29 = int_to_ptr.hbm [resolvable:$true] %s28
      %s30 = sshll.u32 [#allocation5], 4
      %s31 = int_to_ptr.vmem [resolvable:$true] %s30
      %36 = dma.hbm_to_vmem [thread:$0]  %s29, 2048, %s31, [#allocation6], 64, 64, 4
    $region9: #{tpu_custom_call.1} parent=1 // pred_fallthru
      _
    // Predicated region
    $region10: #{tpu_custom_call.1} parent=1 // pred_check
      _
    $region11: #{tpu_custom_call.1} parent=1 // pred_check_branch
      %38 = sbr.rel (0) target = $region13
    $region12: #{tpu_custom_call.1} parent=1 // pred_region
      %40 = vsyncadd [#allocation6], 0
      %s41 = sshll.u32 %s2, 4
      %s42 = int_to_ptr.hbm [resolvable:$true] %s41
      %s43 = sshll.u32 [#allocation7], 4
      %s44 = int_to_ptr.vmem [resolvable:$true] %s43
      %49 = dma.hbm_to_vmem [thread:$0]  %s42, 256, %s44, [#allocation6], 128, 128, 8
    $region13: #{tpu_custom_call.1} parent=1 // pred_fallthru
      _
    // Predicated region
    $region14: #{tpu_custom_call.1} parent=1 // pred_check
      _
    $region15: #{tpu_custom_call.1} parent=1 // pred_check_branch
      %51 = sbr.rel (0) target = $region17
    $region16: #{tpu_custom_call.1} parent=1 // pred_region
      %53 = dma.done [#allocation3], 128
    $region17: #{tpu_custom_call.1} parent=1 // pred_fallthru
      _
    // Predicated region
    $region18: #{tpu_custom_call.1} parent=1 // pred_check
      _
    $region19: #{tpu_custom_call.1} parent=1 // pred_check_branch
      %55 = sbr.rel (0) target = $region21
    $region20: #{tpu_custom_call.1} parent=1 // pred_region
      %57 = dma.done [#allocation6], 2048
    $region21: #{tpu_custom_call.1} parent=1 // pred_fallthru
      _
    // Predicated region
    $region22: #{tpu_custom_call.1} parent=1 // pred_check
      _
    $region23: #{tpu_custom_call.1} parent=1 // pred_check_branch
      %59 = sbr.rel (0) target = $region25
    $region24: #{tpu_custom_call.1} parent=1 // pred_region
      %61 = dma.done [#allocation6], 256
    $region25: #{tpu_custom_call.1} parent=1 // pred_fallthru
      _
    %v62 = vld [vmem:[#allocation2] sm:$0xf]
    %v63 = vld [vmem:[#allocation2 + $0x4] sm:$0xf]
    %v64 = vld [vmem:[#allocation5] sm:$0xf]
    %v65 = vld [vmem:[#allocation5 + $0x4] sm:$0xf]
    %v66 = vld [vmem:[#allocation5 + $0x8] sm:$0xf]
    %v67 = vld [vmem:[#allocation5 + $0xc] sm:$0xf]
    %v68 = vld [vmem:[#allocation5 + $0x10] sm:$0xf]
    %v69 = vld [vmem:[#allocation5 + $0x14] sm:$0xf]
    %v70 = vld [vmem:[#allocation5 + $0x18] sm:$0xf]
    %v71 = vld [vmem:[#allocation5 + $0x1c] sm:$0xf]
    %v72 = vld [vmem:[#allocation5 + $0x20] sm:$0xf]
    %v73 = vld [vmem:[#allocation5 + $0x24] sm:$0xf]
    %v74 = vld [vmem:[#allocation5 + $0x28] sm:$0xf]
    %v75 = vld [vmem:[#allocation5 + $0x2c] sm:$0xf]
    %v76 = vld [vmem:[#allocation5 + $0x30] sm:$0xf]
    %v77 = vld [vmem:[#allocation5 + $0x34] sm:$0xf]
    %v78 = vld [vmem:[#allocation5 + $0x38] sm:$0xf]
    %v79 = vld [vmem:[#allocation5 + $0x3c] sm:$0xf]
    %v80 = vld [vmem:[#allocation7] sm:$0x1]
    %v81 = vperm.slane %v80, 0
    %v84 = vunpack.c.l.b16 %v62
    %v85 = vunpack.c.l.b16 %v63
    %v86 = vpack.c.b16 %v85, %v84
    %v104 = vunpack.c.l.b16 %v64
    %v105 = vunpack.c.l.b16 %v65
    %v106 = vunpack.c.l.b16 %v66
    %v107 = vunpack.c.l.b16 %v67
    %v108 = vunpack.c.l.b16 %v68
    %v109 = vunpack.c.l.b16 %v69
    %v110 = vunpack.c.l.b16 %v70
    %v111 = vunpack.c.l.b16 %v71
    %v112 = vunpack.c.l.b16 %v72
    %v113 = vunpack.c.l.b16 %v73
    %v114 = vunpack.c.l.b16 %v74
    %v115 = vunpack.c.l.b16 %v75
    %v116 = vunpack.c.l.b16 %v76
    %v117 = vunpack.c.l.b16 %v77
    %v118 = vunpack.c.l.b16 %v78
    %v119 = vunpack.c.l.b16 %v79
    %v120 = vpack.c.b16 %v105, %v104
    %v121 = vpack.c.b16 %v107, %v106
    %v122 = vpack.c.b16 %v109, %v108
    %v123 = vpack.c.b16 %v111, %v110
    %v124 = vpack.c.b16 %v113, %v112
    %v125 = vpack.c.b16 %v115, %v114
    %v126 = vpack.c.b16 %v117, %v116
    %v127 = vpack.c.b16 %v119, %v118
    %136 = vmatpush.bf16.msra.mxu0 %v127
    %137 = vmatpush.bf16.msra.mxu0 %v126
    %138 = vmatpush.bf16.msra.mxu0 %v125
    %139 = vmatpush.bf16.msra.mxu0 %v124
    %140 = vmatpush.bf16.msra.mxu0 %v123
    %141 = vmatpush.bf16.msra.mxu0 %v122
    %142 = vmatpush.bf16.msra.mxu0 %v121
    %143 = vmatpush.bf16.msra.mxu0 %v120
    %144 = vmatmul.bf16.gmra.mxu0 %v86
    %v145 = vpop.f32.mrf.mxu0
    %v146 = vadd.f32 %v81, %v145
    %v147 = vpop.f32.mrf.mxu0
    %v148 = vadd.f32 %v81, %v147
    %149 = vdwg.mxu0
    %v150 = vmax.f32 %v146, 0.0
    %v151 = vmax.f32 %v148, 0.0
    %v152 = vpack.c.bf16 %v151, %v150
    %v153 = vld [vmem:[#allocation5 + $0x40] sm:$0xf]
    %v154 = vld [vmem:[#allocation5 + $0x44] sm:$0xf]
    %v155 = vld [vmem:[#allocation5 + $0x48] sm:$0xf]
    %v156 = vld [vmem:[#allocation5 + $0x4c] sm:$0xf]
    %v157 = vld [vmem:[#allocation5 + $0x50] sm:$0xf]
    %v158 = vld [vmem:[#allocation5 + $0x54] sm:$0xf]
    %v159 = vld [vmem:[#allocation5 + $0x58] sm:$0xf]
    %v160 = vld [vmem:[#allocation5 + $0x5c] sm:$0xf]
    %v161 = vld [vmem:[#allocation5 + $0x60] sm:$0xf]
    %v162 = vld [vmem:[#allocation5 + $0x64] sm:$0xf]
    %v163 = vld [vmem:[#allocation5 + $0x68] sm:$0xf]
    %v164 = vld [vmem:[#allocation5 + $0x6c] sm:$0xf]
    %v165 = vld [vmem:[#allocation5 + $0x70] sm:$0xf]
    %v166 = vld [vmem:[#allocation5 + $0x74] sm:$0xf]
    %v167 = vld [vmem:[#allocation5 + $0x78] sm:$0xf]
    %v168 = vld [vmem:[#allocation5 + $0x7c] sm:$0xf]
    %v169 = vld [vmem:[#allocation7 + $0x8] sm:$0x1]
    %v170 = vperm.slane %v169, 0
    %v187 = vunpack.c.l.b16 %v153
    %v188 = vunpack.c.l.b16 %v154
    %v189 = vunpack.c.l.b16 %v155
    %v190 = vunpack.c.l.b16 %v156
    %v191 = vunpack.c.l.b16 %v157
    %v192 = vunpack.c.l.b16 %v158
    %v193 = vunpack.c.l.b16 %v159
    %v194 = vunpack.c.l.b16 %v160
    %v195 = vunpack.c.l.b16 %v161
    %v196 = vunpack.c.l.b16 %v162
    %v197 = vunpack.c.l.b16 %v163
    %v198 = vunpack.c.l.b16 %v164
    %v199 = vunpack.c.l.b16 %v165
    %v200 = vunpack.c.l.b16 %v166
    %v201 = vunpack.c.l.b16 %v167
    %v202 = vunpack.c.l.b16 %v168
    %v203 = vpack.c.b16 %v188, %v187
    %v204 = vpack.c.b16 %v190, %v189
    %v205 = vpack.c.b16 %v192, %v191
    %v206 = vpack.c.b16 %v194, %v193
    %v207 = vpack.c.b16 %v196, %v195
    %v208 = vpack.c.b16 %v198, %v197
    %v209 = vpack.c.b16 %v200, %v199
    %v210 = vpack.c.b16 %v202, %v201
    %219 = vmatpush.bf16.msra.mxu0 %v210
    %220 = vmatpush.bf16.msra.mxu0 %v209
    %221 = vmatpush.bf16.msra.mxu0 %v208
    %222 = vmatpush.bf16.msra.mxu0 %v207
    %223 = vmatpush.bf16.msra.mxu0 %v206
    %224 = vmatpush.bf16.msra.mxu0 %v205
    %225 = vmatpush.bf16.msra.mxu0 %v204
    %226 = vmatpush.bf16.msra.mxu0 %v203
    %227 = vmatmul.bf16.gmra.mxu0 %v152
    %v228 = vpop.f32.mrf.mxu0
    %v229 = vadd.f32 %v170, %v228
    %v230 = vpop.f32.mrf.mxu0
    %v231 = vadd.f32 %v170, %v230
    %232 = vdwg.mxu0
    %v233 = vmax.f32 %v229, 0.0
    %v234 = vmax.f32 %v231, 0.0
    %235 = vst [vmem:[#allocation8] sm:$0xff] %v233
    %236 = vst [vmem:[#allocation8 + $0x8] sm:$0xff] %v234
    // Predicated region
    $region26: #{tpu_custom_call.1} parent=1 // pred_check
      _
    $region27: #{tpu_custom_call.1} parent=1 // pred_check_branch
      %238 = sbr.rel (0) target = $region29
    $region28: #{tpu_custom_call.1} parent=1 // pred_region
      %240 = vsyncadd [#allocation4], 0
      %s241 = sshll.u32 [#allocation8], 4
      %s242 = int_to_ptr.vmem [resolvable:$true] %s241
      %s243 = sshll.u32 %s3, 4
      %s244 = int_to_ptr.hbm [resolvable:$true] %s243
      %249 = dma.vmem_to_hbm [thread:$0]  %s242, 256, %s244, [#allocation4], 128, 128, 8
    $region29: #{tpu_custom_call.1} parent=1 // pred_fallthru
      _
    // Predicated region
    $region30: #{tpu_custom_call.1} parent=1 // pred_check
      _
    $region31: #{tpu_custom_call.1} parent=1 // pred_check_branch
      %251 = sbr.rel (0) target = $region33
    $region32: #{tpu_custom_call.1} parent=1 // pred_region
      %253 = dma.done [#allocation4], 256
    $region33: #{tpu_custom_call.1} parent=1 // pred_fallthru
      _
    %254 = vsyncpa [#allocation3], 1
    %255 = vsyncpa [#allocation6], 1
    %256 = vsyncpa [#allocation4], 1

</llo_original>
